<compile_context>
chip_gen: v7x
topology: tpu7x:2x2x1
jax: 0.10.0
libtpu: 0.0.40
codegen_flags: <defaults>
</compile_context>

<pallas_src>
import functools

import jax
import jax.numpy as jnp
from jax.experimental import pallas as pl
from jax.experimental.pallas import tpu as pltpu

_LANES = 128


def _round_up(x, m):
    return ((x + m - 1) // m) * m


# ---------------------------------------------------------------------------
# Pallas kernels
# ---------------------------------------------------------------------------
def _gmof_weighted(p_ref, t_ref, w_ref, sigma):
    """Weighted Geman-McClure of the squared error, computed in f32."""
    p = p_ref[...].astype(jnp.float32)
    t = t_ref[...].astype(jnp.float32)
    w = w_ref[...].astype(jnp.float32)
    d = p - t
    se = d * d
    s2 = jnp.float32(sigma * sigma)
    # g = s2 * se^2 / (s2 + se); reciprocal rides the EUP slot (exact mode for
    # bit-level safety against the reference).
    g = (s2 * se * se) * pl.reciprocal(s2 + se, approx=False)
    return g * w


def _kp_mse_none_kernel(p_ref, t_ref, w_ref, o_ref, *, sigma, loss_weight):
    """Elementwise GMOF-MSE, no reduction. Lane-dense (TR, 128) tiles."""
    wl = _gmof_weighted(p_ref, t_ref, w_ref, sigma)
    o_ref[...] = (wl * jnp.float32(loss_weight)).astype(o_ref.dtype)


def _kp_mse_reduce_kernel(p_ref, t_ref, w_ref, out_ref, acc_ref, *, sigma, scale):
    """GMOF-MSE reduced to a scalar across the whole 1-D grid."""
    @pl.when(pl.program_id(0) == 0)
    def _init():
        acc_ref[...] = jnp.zeros_like(acc_ref)

    # Per-tile partial sum: elementwise VPU adds into a resident f32 scratch.
    acc_ref[...] += _gmof_weighted(p_ref, t_ref, w_ref, sigma)

    @pl.when(pl.program_id(0) == pl.num_programs(0) - 1)
    def _finalize():
        out_ref[0, 0] = jnp.sum(acc_ref[...]) * jnp.float32(scale)


# ---------------------------------------------------------------------------
# Wrapper = KeypointMSELoss.forward
# ---------------------------------------------------------------------------
def _flatten_pad(x, rows):
    """Flatten to 1-D and zero-pad to rows*128, then view as (rows, 128)."""
    x = x.reshape(-1)
    n_pad = rows * _LANES
    if x.size != n_pad:
        x = jnp.pad(x, (0, n_pad - x.size))
    return x.reshape(rows, _LANES)


def keypoint_mse_loss(
    pred,
    target,
    pred_conf=None,
    target_conf=None,
    keypoint_weight=None,
    avg_factor=None,
    *,
    reduction="mean",
    loss_weight=1.0,
    sigma=1.0,
    block_rows=512,
):
    assert reduction in (None, "none", "mean", "sum")
    reduction = "none" if reduction is None else reduction
    assert pred.ndim == 3 and pred.shape == target.shape
    B, K, D = pred.shape
    N = B * K * D

    # ---- fused weight: kp_w * pred_conf * target_conf on the small (B, K) grid
    w = None
    if keypoint_weight is not None:
        assert keypoint_weight.size == K, (
            f"keypoint_weight must have shape (K,)=({K},), got {keypoint_weight.shape}"
        )
        w = jnp.broadcast_to(
            keypoint_weight.reshape(1, K).astype(jnp.float32), (B, K)
        )
    if pred_conf is not None:
        pc = pred_conf.reshape(B, K).astype(jnp.float32)
        w = pc if w is None else w * pc
    if target_conf is not None:
        tc = target_conf.reshape(B, K).astype(jnp.float32)
        w = tc if w is None else w * tc
    if w is None:
        w = jnp.ones((B, K), dtype=jnp.float32)
    # Expand along D so the kernel can stay purely lane-dense on the flat layout.
    # TODO(synk): the D-fold weight broadcast is done once in XLA; fusing it into
    # the kernel would need an in-kernel lane interleave (no clean Pallas op).
    w_full = jnp.broadcast_to(w[:, :, None], (B, K, D))

    # ---- lane-dense flattening / tiling
    rows_data = -(-N // _LANES)                       # ceil(N / 128)
    tr = min(block_rows, _round_up(rows_data, 8))     # block rows (multiple of 8)
    rows = _round_up(rows_data, tr)                   # padded row count
    num_blocks = rows // tr

    p2 = _flatten_pad(pred, rows)      # native dtype (no wrapper f32 upcast)
    t2 = _flatten_pad(target, rows)    # native dtype
    w2 = _flatten_pad(w_full, rows)    # f32 weight stream

    row_spec = pl.BlockSpec((tr, _LANES), lambda i: (i, 0))

    if reduction == "none":
        kernel = functools.partial(
            _kp_mse_none_kernel, sigma=float(sigma), loss_weight=float(loss_weight)
        )
        out = pl.pallas_call(
            kernel,
            out_shape=jax.ShapeDtypeStruct((rows, _LANES), pred.dtype),
            grid=(num_blocks,),
            in_specs=[row_spec, row_spec, row_spec],
            out_specs=row_spec,
            compiler_params=pltpu.CompilerParams(
                dimension_semantics=("parallel",),      # megacore-friendly
                vmem_limit_bytes=32 * 1024 * 1024,      # safe headroom on v5e/v6e/v7x
            ),
        )(p2, t2, w2)
        return out.reshape(-1)[:N].reshape(B, K, D)

    # ---- reduced path ('mean' / 'sum')
    if avg_factor is not None:
        if reduction != "mean":
            raise ValueError('avg_factor can not be used with reduction="sum"')
        scale = float(loss_weight) / float(avg_factor)
    elif reduction == "mean":
        scale = float(loss_weight) / float(N)
    else:  # 'sum'
        scale = float(loss_weight)

    kernel = functools.partial(_kp_mse_reduce_kernel, sigma=float(sigma), scale=scale)
    out = pl.pallas_call(
        kernel,
        out_shape=jax.ShapeDtypeStruct((1, 1), jnp.float32),
        grid=(num_blocks,),
        in_specs=[row_spec, row_spec, row_spec],
        out_specs=pl.BlockSpec(
            (1, 1), lambda i: (0, 0), memory_space=pltpu.MemorySpace.SMEM
        ),
        scratch_shapes=[pltpu.VMEM((tr, _LANES), jnp.float32)],
        compiler_params=pltpu.CompilerParams(
            dimension_semantics=("arbitrary",),         # accumulating reduction
            vmem_limit_bytes=32 * 1024 * 1024,
        ),
    )(p2, t2, w2)
    return out[0, 0]


# ---------------------------------------------------------------------------
# Pure-JAX reference (sanity check only)
# ---------------------------------------------------------------------------
def _reference(pred, target, w, reduction, loss_weight, sigma, avg_factor=None):
    se = (pred - target) ** 2
    s2 = sigma * sigma
    g = s2 * se * se / (s2 + se)
    loss = g * w
    if avg_factor is not None and reduction == "mean":
        loss = loss.sum() / avg_factor
    elif reduction == "mean":
        loss = loss.mean()
    elif reduction == "sum":
        loss = loss.sum()
    return loss_weight * loss


if __name__ == "__main__":
    key = jax.random.PRNGKey(0)
    k1, k2, k3, k4, k5 = jax.random.split(key, 5)

    # Small shapes implied by the module: (B, K, D) keypoints
    B, K, D = 2, 8, 3
    pred = jax.random.normal(k1, (B, K, D), dtype=jnp.float32)
    target = jax.random.normal(k2, (B, K, D), dtype=jnp.float32)
    pred_conf = jax.random.uniform(k3, (B, K), dtype=jnp.float32)
    target_conf = jax.random.uniform(k4, (B, K), dtype=jnp.float32)
    keypoint_weight = jax.random.uniform(k5, (K,), dtype=jnp.float32)

    loss_weight = 1.0
    sigma = 2.0

    loss_mean = keypoint_mse_loss(
        pred, target, pred_conf, target_conf, keypoint_weight,
        reduction="mean", loss_weight=loss_weight, sigma=sigma,
    )
    loss_sum = keypoint_mse_loss(
        pred, target, pred_conf, target_conf, keypoint_weight,
        reduction="sum", loss_weight=loss_weight, sigma=sigma,
    )
    loss_none = keypoint_mse_loss(
        pred, target, pred_conf, target_conf, keypoint_weight,
        reduction="none", loss_weight=loss_weight, sigma=sigma,
    )
    loss_avg = keypoint_mse_loss(
        pred, target, pred_conf, target_conf, keypoint_weight,
        avg_factor=10.0, reduction="mean", loss_weight=loss_weight, sigma=sigma,
    )
    jax.block_until_ready((loss_mean, loss_sum, loss_none, loss_avg))

    w_ref = (keypoint_weight.reshape(1, K, 1)
             * pred_conf.reshape(B, K, 1)
             * target_conf.reshape(B, K, 1))
    assert jnp.allclose(loss_mean, _reference(pred, target, w_ref, "mean", loss_weight, sigma),
                        rtol=1e-5, atol=1e-6)
    assert jnp.allclose(loss_sum, _reference(pred, target, w_ref, "sum", loss_weight, sigma),
                        rtol=1e-5, atol=1e-6)
    assert jnp.allclose(loss_none, _reference(pred, target, w_ref, "none", loss_weight, sigma),
                        rtol=1e-5, atol=1e-6)
    assert jnp.allclose(loss_avg, _reference(pred, target, w_ref, "mean", loss_weight, sigma,
                                             avg_factor=10.0),
                        rtol=1e-5, atol=1e-6)

    # A second case that exercises the multi-block grid + accumulator path
    # (N = 96*256*3 = 73728 -> 576 rows of 128 -> padded to 2 blocks of 512 rows).
    B2, K2, D2 = 96, 256, 3
    kb1, kb2, kb3 = jax.random.split(jax.random.PRNGKey(1), 3)
    pred2 = jax.random.normal(kb1, (B2, K2, D2), dtype=jnp.float32)
    target2 = jax.random.normal(kb2, (B2, K2, D2), dtype=jnp.float32)
    conf2 = jax.random.uniform(kb3, (B2, K2), dtype=jnp.float32)

    l2_mean = keypoint_mse_loss(pred2, target2, conf2, None, None,
                                reduction="mean", loss_weight=0.5, sigma=1.0)
    l2_none = keypoint_mse_loss(pred2, target2, conf2, None, None,
                                reduction="none", loss_weight=0.5, sigma=1.0)
    jax.block_until_ready((l2_mean, l2_none))

    w2_ref = conf2.reshape(B2, K2, 1)
    assert jnp.allclose(l2_mean, _reference(pred2, target2, w2_ref, "mean", 0.5, 1.0),
                        rtol=1e-4, atol=1e-6)
    assert jnp.allclose(l2_none, _reference(pred2, target2, w2_ref, "none", 0.5, 1.0),
                        rtol=1e-5, atol=1e-6)

    print("KERNEL_OK")
</pallas_src>

<mosaic_0001>
module attributes {stable_mosaic.version = 11 : i64} {
  func.func @_kp_mse_reduce_kernel(%arg0: i32, %arg1: memref<8x128xf32, #tpu.memory_space<vmem>>, %arg2: memref<8x128xf32, #tpu.memory_space<vmem>>, %arg3: memref<8x128xf32, #tpu.memory_space<vmem>>, %arg4: memref<1x1xf32, #tpu.memory_space<smem>>, %arg5: memref<8x128xf32, #tpu.memory_space<vmem>>) attributes {dimension_semantics = [#tpu.dimension_semantics<arbitrary>], iteration_bounds = array<i64: 1>, scalar_prefetch = 0 : i64, scratch_operands = 1 : i64, tpu.core_type = #tpu.core_type<tc>, window_params = [{transform_indices = @transform_0, window_bounds = array<i64: 8, 128>}, {transform_indices = @transform_1, window_bounds = array<i64: 8, 128>}, {transform_indices = @transform_2, window_bounds = array<i64: 8, 128>}, {transform_indices = @transform_3, window_bounds = array<i64: 1, 1>}]} {
    %c0_i32 = arith.constant 0 : i32
    %0 = arith.cmpi eq, %arg0, %c0_i32 : i32
    %1 = arith.extui %0 : i1 to i32
    %c0_i32_0 = arith.constant 0 : i32
    %2 = arith.cmpi ne, %1, %c0_i32_0 : i32
    scf.if %2 {
      %cst_13 = arith.constant 0.000000e+00 : f32
      %22 = vector.broadcast %cst_13 : f32 to vector<8x128xf32>
      %c0_14 = arith.constant 0 : index
      %c0_15 = arith.constant 0 : index
      %23 = vector.load %arg5[%c0_14, %c0_15] : memref<8x128xf32, #tpu.memory_space<vmem>>, vector<8x128xf32>
      tpu.vector_store %arg5[%c0_14, %c0_15], %22 {strides = array<i32>} : memref<8x128xf32, #tpu.memory_space<vmem>>, vector<8x128xf32>,
    } else {
    }
    %c0 = arith.constant 0 : index
    %c0_1 = arith.constant 0 : index
    %3 = vector.load %arg5[%c0, %c0_1] : memref<8x128xf32, #tpu.memory_space<vmem>>, vector<8x128xf32>
    %c0_2 = arith.constant 0 : index
    %c0_3 = arith.constant 0 : index
    %4 = vector.load %arg1[%c0_2, %c0_3] : memref<8x128xf32, #tpu.memory_space<vmem>>, vector<8x128xf32>
    %c0_4 = arith.constant 0 : index
    %c0_5 = arith.constant 0 : index
    %5 = vector.load %arg2[%c0_4, %c0_5] : memref<8x128xf32, #tpu.memory_space<vmem>>, vector<8x128xf32>
    %c0_6 = arith.constant 0 : index
    %c0_7 = arith.constant 0 : index
    %6 = vector.load %arg3[%c0_6, %c0_7] : memref<8x128xf32, #tpu.memory_space<vmem>>, vector<8x128xf32>
    %7 = arith.subf %4, %5 : vector<8x128xf32>
    %8 = arith.mulf %7, %7 : vector<8x128xf32>
    %cst = arith.constant 4.000000e+00 : f32
    %9 = vector.broadcast %cst : f32 to vector<8x128xf32>
    %10 = arith.mulf %9, %8 : vector<8x128xf32>
    %11 = arith.mulf %10, %8 : vector<8x128xf32>
    %cst_8 = arith.constant 4.000000e+00 : f32
    %12 = vector.broadcast %cst_8 : f32 to vector<8x128xf32>
    %13 = arith.addf %12, %8 : vector<8x128xf32>
    %14 = tpu.reciprocal %13 : vector<8x128xf32> -> vector<8x128xf32>
    %15 = arith.mulf %11, %14 : vector<8x128xf32>
    %16 = arith.mulf %15, %6 : vector<8x128xf32>
    %17 = arith.addf %3, %16 : vector<8x128xf32>
    %c0_9 = arith.constant 0 : index
    %c0_10 = arith.constant 0 : index
    %18 = vector.load %arg5[%c0_9, %c0_10] : memref<8x128xf32, #tpu.memory_space<vmem>>, vector<8x128xf32>
    tpu.vector_store %arg5[%c0_9, %c0_10], %17 {strides = array<i32>} : memref<8x128xf32, #tpu.memory_space<vmem>>, vector<8x128xf32>,
    %c0_i32_11 = arith.constant 0 : i32
    %19 = arith.cmpi eq, %arg0, %c0_i32_11 : i32
    %20 = arith.extui %19 : i1 to i32
    %c0_i32_12 = arith.constant 0 : i32
    %21 = arith.cmpi ne, %20, %c0_i32_12 : i32
    scf.if %21 {
      %c0_13 = arith.constant 0 : index
      %c0_14 = arith.constant 0 : index
      %22 = vector.load %arg5[%c0_13, %c0_14] : memref<8x128xf32, #tpu.memory_space<vmem>>, vector<8x128xf32>
      %23 = vector.shape_cast %22 : vector<8x128xf32> to vector<1x8x128xf32>
      %cst_15 = arith.constant dense<0.000000e+00> : vector<1xf32>
      %24 = vector.multi_reduction <add>, %23, %cst_15 [1, 2] : vector<1x8x128xf32> to vector<1xf32>
      %25 = vector.shape_cast %24 : vector<1xf32> to vector<1x1x1xf32>
      %26 = vector.extract %25[0, 0, 0] : f32 from vector<1x1x1xf32>
      %cst_16 = arith.constant 0.020833334 : f32
      %27 = arith.mulf %26, %cst_16 : f32
      %c0_17 = arith.constant 0 : index
      %c0_18 = arith.constant 0 : index
      %28 = memref.load %arg4[%c0_17, %c0_18] : memref<1x1xf32, #tpu.memory_space<smem>>
      memref.store %27, %arg4[%c0_17, %c0_18] : memref<1x1xf32, #tpu.memory_space<smem>>
    } else {
    }
    return
  }
  func.func @transform_0(%arg0: i32) -> (i32, i32) {
    %c0_i32 = arith.constant 0 : i32
    %c0_i32_0 = arith.constant 0 : i32
    return %arg0, %c0_i32 : i32, i32
  }
  func.func @transform_1(%arg0: i32) -> (i32, i32) {
    %c0_i32 = arith.constant 0 : i32
    %c0_i32_0 = arith.constant 0 : i32
    return %arg0, %c0_i32 : i32, i32
  }
  func.func @transform_2(%arg0: i32) -> (i32, i32) {
    %c0_i32 = arith.constant 0 : i32
    %c0_i32_0 = arith.constant 0 : i32
    return %arg0, %c0_i32 : i32, i32
  }
  func.func @transform_3(%arg0: i32) -> (i32, i32) {
    %c0_i32 = arith.constant 0 : i32
    %c0_i32_0 = arith.constant 0 : i32
    %c0_i32_1 = arith.constant 0 : i32
    return %c0_i32, %c0_i32_0 : i32, i32
  }
}

</mosaic_0001>

<llo_original>
// kernel: tpu_custom_call.1
$region0: #{tpu_custom_call.1}
  #allocation0 [shape = 'u32[]', space=smem, size = 0x4, offset = 0x4, fixed_abs, tag = 'smem constant byte address 0x4 - core index']
  #allocation1 [shape = 'u32[144,128]{1,0:T(1,128)}', space=vmem, size = 0x12000, scoped, tag = 'internal scratch']
  #allocation2 [shape = 'f32[8,128]{1,0:T(8,128)}', space=vmem, size = 0x1000, scoped, tag = 'scratch operand']
  %s0 = inlined_call_operand.hbm [shape: f32[8,128], index: 0, kind: input, shape index: {}]
  %s1 = inlined_call_operand.hbm [shape: f32[8,128], index: 1, kind: input, shape index: {}]
  %s2 = inlined_call_operand.hbm [shape: f32[8,128], index: 2, kind: input, shape index: {}]
  %s3 = inlined_call_operand.hbm [shape: f32[1,1], index: 3, kind: output, shape index: {}]
  %s4 = sld [smem:[#allocation0]]
  $region42: #{tpu_custom_call.1} parent=0
    _
  %s6 = ssub.s32 1, %s4
  %s7 = scalar_select 0, %s6, %s4
  $region1: #{tpu_custom_call.1} parent=0
    #allocation3 [shape = 'u8[4096]{0}', space=vmem, size = 0x1000, scoped, tag = 'input window, operand 0, single buffered']
    #allocation4 [shape = 's32[1]{0}', space=sflag, size = 0x4, scoped, tag = 'scoped memory for tpu_custom_call.1']
    #allocation5 [shape = 's32[1]{0}', space=sflag, size = 0x4, scoped, tag = 'scoped memory for tpu_custom_call.1']
    #allocation6 [shape = 'u8[4096]{0}', space=vmem, size = 0x1000, scoped, tag = 'input window, operand 1, single buffered']
    #allocation7 [shape = 's32[1]{0}', space=sflag, size = 0x4, scoped, tag = 'scoped memory for tpu_custom_call.1']
    #allocation8 [shape = 'u8[4096]{0}', space=vmem, size = 0x1000, scoped, tag = 'input window, operand 2, single buffered']
    #allocation9 [shape = 'u8[512]{0}', space=smem, size = 0x200, scoped, tag = 'output window, operand 0, single buffered']
    %8 = vsyncpa [#allocation4], 0
    %9 = vsyncpa [#allocation7], 0
    %10 = vsyncpa [#allocation5], 0
    // Predicated region
    $region2: #{tpu_custom_call.1} parent=1 // pred_check
      _
    $region3: #{tpu_custom_call.1} parent=1 // pred_check_branch
      %12 = sbr.rel (0) target = $region5
    $region4: #{tpu_custom_call.1} parent=1 // pred_region
      %s14 = ssub.s32 128, 128
      %15 = vsyncadd [#allocation4], %s14
      %s17 = sshll.u32 [#allocation3], 4
      %s18 = int_to_ptr.vmem [resolvable:$true] %s17
      %20 = dma.hbm_to_vmem [thread:$0]  %s0, 128, %s18, [#allocation4]
    $region5: #{tpu_custom_call.1} parent=1 // pred_fallthru
      _
    // Predicated region
    $region6: #{tpu_custom_call.1} parent=1 // pred_check
      _
    $region7: #{tpu_custom_call.1} parent=1 // pred_check_branch
      %22 = sbr.rel (0) target = $region9
    $region8: #{tpu_custom_call.1} parent=1 // pred_region
      %s24 = ssub.s32 128, 128
      %25 = vsyncadd [#allocation7], %s24
      %s27 = sshll.u32 [#allocation6], 4
      %s28 = int_to_ptr.vmem [resolvable:$true] %s27
      %30 = dma.hbm_to_vmem [thread:$0]  %s1, 128, %s28, [#allocation7]
    $region9: #{tpu_custom_call.1} parent=1 // pred_fallthru
      _
    // Predicated region
    $region10: #{tpu_custom_call.1} parent=1 // pred_check
      _
    $region11: #{tpu_custom_call.1} parent=1 // pred_check_branch
      %32 = sbr.rel (0) target = $region13
    $region12: #{tpu_custom_call.1} parent=1 // pred_region
      %s34 = ssub.s32 128, 128
      %35 = vsyncadd [#allocation7], %s34
      %s37 = sshll.u32 [#allocation8], 4
      %s38 = int_to_ptr.vmem [resolvable:$true] %s37
      %40 = dma.hbm_to_vmem [thread:$0]  %s2, 128, %s38, [#allocation7]
    $region13: #{tpu_custom_call.1} parent=1 // pred_fallthru
      _
    // Predicated region
    $region14: #{tpu_custom_call.1} parent=1 // pred_check
      _
    $region15: #{tpu_custom_call.1} parent=1 // pred_check_branch
      %42 = sbr.rel (0) target = $region17
    $region16: #{tpu_custom_call.1} parent=1 // pred_region
      %43 = dma.done [#allocation4], 128
    $region17: #{tpu_custom_call.1} parent=1 // pred_fallthru
      _
    // Predicated region
    $region18: #{tpu_custom_call.1} parent=1 // pred_check
      _
    $region19: #{tpu_custom_call.1} parent=1 // pred_check_branch
      %45 = sbr.rel (0) target = $region21
    $region20: #{tpu_custom_call.1} parent=1 // pred_region
      %46 = dma.done [#allocation7], 128
    $region21: #{tpu_custom_call.1} parent=1 // pred_fallthru
      _
    // Predicated region
    $region22: #{tpu_custom_call.1} parent=1 // pred_check
      _
    $region23: #{tpu_custom_call.1} parent=1 // pred_check_branch
      %48 = sbr.rel (0) target = $region25
    $region24: #{tpu_custom_call.1} parent=1 // pred_region
      %49 = dma.done [#allocation7], 128
    $region25: #{tpu_custom_call.1} parent=1 // pred_fallthru
      _
    %p50 = scmp.eq.s32.totalorder 0, 0
    // Predicated region
    $region26: #{tpu_custom_call.1} parent=1 // pred_check
      %p51 = pneg %p50
    $region27: #{tpu_custom_call.1} parent=1 // pred_check_branch
      %53 = sbr.rel (%p51) target = $region29
    $region28: #{tpu_custom_call.1} parent=1 // pred_region
      %54 = vst [vmem:[#allocation2] sm:$0xff] 0.0
    $region29: #{tpu_custom_call.1} parent=1 // pred_fallthru
      _
    %v55 = vld [vmem:[#allocation2] sm:$0xff]
    %v56 = vld [vmem:[#allocation3] sm:$0xff]
    %v57 = vld [vmem:[#allocation6] sm:$0xff]
    %v58 = vld [vmem:[#allocation8] sm:$0xff]
    %v59 = vsub.f32 %v56, %v57
    %v60 = vmul.f32 %v59, %v59
    %v61 = vmul.f32 %v60, 4.0
    %v62 = vmul.f32 %v61, %v60
    %v63 = vadd.f32 %v60, 4.0
    %v64 = vrcp.pop %v63
    %v65 = vmul.f32 %v62, %v64
    %v66 = vmul.f32 %v65, %v58
    %v67 = vadd.f32 %v55, %v66
    %68 = vst [vmem:[#allocation2] sm:$0xff] %v67
    // Predicated region
    $region30: #{tpu_custom_call.1} parent=1 // pred_check
      %p69 = pneg %p50
    $region31: #{tpu_custom_call.1} parent=1 // pred_check_branch
      %71 = sbr.rel (%p69) target = $region33
    $region32: #{tpu_custom_call.1} parent=1 // pred_region
      %v72 = vld [vmem:[#allocation2] sm:$0xff]
      %73 = vadd.xlane.f32.xlu0 %v72
      %v74 = vpop.xlane.xlu0 %73
      %v75 = vrot.slane %v74, 4
      %v76 = vadd.f32 %v74, %v75
      %v77 = vrot.slane %v76, 2
      %v78 = vadd.f32 %v76, %v77
      %v79 = vrot.slane %v78, 1
      %v80 = vadd.f32 %v78, %v79
      %s81 = vtos %v80
      %s82 = smul.f32 %s81, 0.020833334
      %s83 = scalar_lea.smem [#allocation9], 0
      %84 = sst [smem:[%s83]] %s82
    $region33: #{tpu_custom_call.1} parent=1 // pred_fallthru
      _
    // Predicated region
    $region34: #{tpu_custom_call.1} parent=1 // pred_check
      _
    $region35: #{tpu_custom_call.1} parent=1 // pred_check_branch
      %86 = sbr.rel (0) target = $region37
    $region36: #{tpu_custom_call.1} parent=1 // pred_region
      %s88 = ssub.s32 16, 16
      %89 = vsyncadd [#allocation5], %s88
      %92 = dma.smem_to_hbm [#allocation9], 16, %s3, [#allocation5]
    $region37: #{tpu_custom_call.1} parent=1 // pred_fallthru
      _
    // Predicated region
    $region38: #{tpu_custom_call.1} parent=1 // pred_check
      _
    $region39: #{tpu_custom_call.1} parent=1 // pred_check_branch
      %94 = sbr.rel (0) target = $region41
    $region40: #{tpu_custom_call.1} parent=1 // pred_region
      %95 = dma.done [#allocation5], 16
    $region41: #{tpu_custom_call.1} parent=1 // pred_fallthru
      _
    %96 = sfence
    %97 = vsyncpa [#allocation4], 1
    %98 = vsyncpa [#allocation7], 1
    %99 = vsyncpa [#allocation5], 1

</llo_original>
